<compile_context>
chip_gen: v7x
topology: tpu7x:2x2x1
jax: 0.10.0
libtpu: 0.0.40
codegen_flags: <defaults>
</compile_context>

<pallas_src>
import functools
import math

import jax
import jax.numpy as jnp
from jax import lax
from jax.experimental import pallas as pl
from jax.experimental.pallas import tpu as pltpu

_SQRT2 = math.sqrt(2.0)
_LANE = 128          # TPU lane width: the input feature dim is zero-padded to this
_MAX_UNROLL = 8      # above this many hidden layers use lax.fori_loop


# ------------------------------ Pallas kernels ------------------------------
# Activations are kept feature-major: h has shape (width, tile_m), i.e. the batch
# dimension lives on the 128-lane axis.  Every intermediate tile and the output block
# are lane-dense, and the weights are used directly in PyTorch (out, in) layout.

def _mlp_kernel(xt_ref, w_in_ref, w_hid_ref, w_out_ref, o_ref, *, n_hidden,
                compute_dtype):
    # initial layer: (width, d_pad) @ (d_pad, tile_m) -> f32 (width, tile_m)
    h = jnp.dot(w_in_ref[...], xt_ref[...], preferred_element_type=jnp.float32)
    # hidden layers; the relu*sqrt(2) scale is pre-folded into the *next* weight,
    # so only a relu (and a cast back to the MXU dtype) is needed here.
    if n_hidden <= _MAX_UNROLL:
        for l in range(n_hidden):
            a = jnp.maximum(h, 0.0).astype(compute_dtype)
            h = jnp.dot(w_hid_ref[l], a, preferred_element_type=jnp.float32)
    else:
        def body(l, hc):
            a = jnp.maximum(hc, 0.0).astype(compute_dtype)
            return jnp.dot(w_hid_ref[l], a, preferred_element_type=jnp.float32)
        h = lax.fori_loop(0, n_hidden, body, h)
    h = jnp.maximum(h, 0.0)
    # final Linear(width, 1): elementwise scale by the (width, 1) column + reduction
    # over the feature (sublane) axis -> lane-dense (1, tile_m) row.  VPU + XLU only;
    # the MXU never sees an N=1 matmul.
    o_ref[...] = jnp.sum(h * w_out_ref[...], axis=0,
                         keepdims=True).astype(o_ref.dtype)


def _mlp_kernel_no_hidden(xt_ref, w_in_ref, w_out_ref, o_ref):
    h = jnp.dot(w_in_ref[...], xt_ref[...], preferred_element_type=jnp.float32)
    h = jnp.maximum(h, 0.0)
    o_ref[...] = jnp.sum(h * w_out_ref[...], axis=0,
                         keepdims=True).astype(o_ref.dtype)


# -------------------------------- wrapper ------------------------------------

def _replicated_spec(shape, buffer_count):
    """BlockSpec for a grid-invariant, VMEM-resident operand (the weights)."""
    zeros = (0,) * len(shape)
    if buffer_count is None:
        return pl.BlockSpec(shape, lambda i: zeros)
    # v7x option: weights are grid-invariant, so a single buffer halves their VMEM.
    return pl.BlockSpec(shape, lambda i: zeros,
                        pipeline_mode=pl.Buffered(buffer_count))


def simplenet_forward(x, kernel_params, *, block_m=256, core_parallel=False,
                      weight_buffer_count=None,
                      vmem_limit_bytes=64 * 1024 * 1024):
    """Fused SimpleNet forward pass (a single pallas_call).

    x:             (M, d_in) float array.
    kernel_params: output of `prepare_params` (padded / sqrt(2)-folded / cast);
                   weights are in native PyTorch (out, in) layout.
    core_parallel / weight_buffer_count: opt-in v7x tuning knobs (see review notes).
    """
    w_in, w_hid, w_out_col = kernel_params
    M, d_in = x.shape
    width, d_pad = w_in.shape
    n_hidden = 0 if w_hid is None else w_hid.shape[0]
    compute_dtype = w_in.dtype

    # ---- input plumbing (XLA side, fused with the unavoidable dtype cast) ----
    # zero-pad the feature dim to a full 128 lanes and go feature-major (d_pad, M).
    if d_pad != d_in:
        x = jnp.pad(x, ((0, 0), (0, d_pad - d_in)))
    xt = x.T.astype(compute_dtype)

    # ---- batch tiling: one block for small M, else block_m-row tiles + padding ----
    if M <= block_m:
        tm, m_pad = M, M
    else:
        tm = block_m
        m_pad = pl.cdiv(M, tm) * tm
        if m_pad != M:
            xt = jnp.pad(xt, ((0, 0), (0, m_pad - M)))
    grid = (m_pad // tm,)

    in_specs = [pl.BlockSpec((d_pad, tm), lambda i: (0, i)),            # input tile
                _replicated_spec((width, d_pad), weight_buffer_count)]  # w_in
    args = [xt, w_in]
    if n_hidden > 0:
        in_specs.append(_replicated_spec((n_hidden, width, width),
                                         weight_buffer_count))          # w_hid
        args.append(w_hid)
    in_specs.append(_replicated_spec((width, 1), weight_buffer_count))  # w_out column
    args.append(w_out_col)

    kernel = (functools.partial(_mlp_kernel, n_hidden=n_hidden,
                                compute_dtype=compute_dtype)
              if n_hidden > 0 else _mlp_kernel_no_hidden)

    itemsize = jnp.dtype(compute_dtype).itemsize
    flops = 2 * m_pad * (d_pad * width + n_hidden * width * width + width)
    bytes_accessed = (m_pad * d_pad * itemsize
                      + (width * d_pad + n_hidden * width * width + width) * itemsize
                      + m_pad * 4)

    out = pl.pallas_call(
        kernel,
        out_shape=jax.ShapeDtypeStruct((1, m_pad), jnp.float32),
        grid_spec=pltpu.PrefetchScalarGridSpec(
            num_scalar_prefetch=0,
            grid=grid,
            in_specs=in_specs,
            # lane-dense output row: batch on the 128-lane axis, no masked (tm,1) stores
            out_specs=pl.BlockSpec((1, tm), lambda i: (0, i)),
        ),
        compiler_params=pltpu.CompilerParams(
            # batch axis is embarrassingly parallel; on v7x (2 TensorCores) switch to
            # CORE_PARALLEL once the grid has >= 2 evenly sized batch blocks.
            dimension_semantics=((pltpu.CORE_PARALLEL,) if core_parallel
                                 else ("parallel",)),
            vmem_limit_bytes=vmem_limit_bytes,
        ),
        cost_estimate=pl.CostEstimate(flops=flops, transcendentals=0,
                                      bytes_accessed=bytes_accessed),
    )(*args)

    return out[0, :M].reshape(M, 1)


# --------------------------- params & references ------------------------------

def init_params(key, initial, depth, width):
    """Deterministic synthetic SimpleNet weights in native PyTorch (out, in) layout."""
    assert depth >= 2
    n_hidden = depth - 2
    ks = jax.random.split(key, 3)
    w_in = jax.random.normal(ks[0], (width, initial), jnp.float32) / math.sqrt(initial)
    w_hid = (jax.random.normal(ks[1], (n_hidden, width, width), jnp.float32)
             / math.sqrt(width)) if n_hidden > 0 else None
    w_out = jax.random.normal(ks[2], (1, width), jnp.float32) / math.sqrt(width)
    return (w_in, w_hid, w_out)


def prepare_params(params, *, compute_dtype=jnp.bfloat16, lane=_LANE):
    """One-time parameter prep for the kernel:
       * zero-pad the input-feature dim of the first weight to a full 128 lanes,
       * fold the relu*sqrt(2) scale of the preceding activation into every
         downstream weight (kernel has no per-element multiplies left),
       * reshape the final weight to a (width, 1) column for the VPU reduction,
       * cast everything to the MXU compute dtype (bf16 for v6e/v7x peak)."""
    w_in, w_hid, w_out = params
    width, d_in = w_in.shape
    d_pad = pl.cdiv(d_in, lane) * lane
    w_in_p = jnp.pad(w_in, ((0, 0), (0, d_pad - d_in))).astype(compute_dtype)
    w_hid_p = (w_hid * _SQRT2).astype(compute_dtype) if w_hid is not None else None
    w_out_col = (w_out * _SQRT2).reshape(width, 1).astype(compute_dtype)
    return (w_in_p, w_hid_p, w_out_col)


def simplenet_reference(x, params):
    """Pure-JAX f32 reference with the original PyTorch semantics."""
    w_in, w_hid, w_out = params
    h = jnp.maximum(x @ w_in.T, 0.0) * _SQRT2
    if w_hid is not None:
        for l in range(w_hid.shape[0]):
            h = jnp.maximum(h @ w_hid[l].T, 0.0) * _SQRT2
    return h @ w_out.T


def simplenet_matched_reference(x, kernel_params):
    """Pure-JAX reference mirroring the kernel numerics exactly
    (padded / folded / cast params, f32 accumulation, elementwise final layer)."""
    w_in_p, w_hid_p, w_out_col = kernel_params
    cdt = w_in_p.dtype
    d_pad = w_in_p.shape[1]
    xp = jnp.pad(x, ((0, 0), (0, d_pad - x.shape[1]))).astype(cdt)
    h = jnp.dot(xp, w_in_p.T, preferred_element_type=jnp.float32)
    if w_hid_p is not None:
        for l in range(w_hid_p.shape[0]):
            h = jnp.dot(jnp.maximum(h, 0.0).astype(cdt), w_hid_p[l].T,
                        preferred_element_type=jnp.float32)
    h = jnp.maximum(h, 0.0)
    return jnp.sum(h * w_out_col.astype(jnp.float32).T, axis=-1, keepdims=True)


# ----------------------------------- main -------------------------------------

if __name__ == "__main__":
    INITIAL, DEPTH, WIDTH = 32, 4, 128          # depth=4 -> 2 hidden layers

    key = jax.random.PRNGKey(0)
    kx_a, kx_b, kp = jax.random.split(key, 3)
    params = init_params(kp, INITIAL, DEPTH, WIDTH)

    fwd = jax.jit(simplenet_forward)

    # ---- config A: small batch, f32 operands, single block ---------------------
    # Strict numerical check of the fused kernel against the PyTorch-semantics ref.
    x_a = jax.random.normal(kx_a, (64, INITIAL), jnp.float32)
    kparams_f32 = prepare_params(params, compute_dtype=jnp.float32)
    out_a = jax.block_until_ready(fwd(x_a, kparams_f32))
    assert out_a.shape == (64, 1) and out_a.dtype == jnp.float32
    ref_a = simplenet_reference(x_a, params)
    assert jnp.allclose(out_a, ref_a, atol=2e-4, rtol=2e-4), "f32 mismatch vs reference"

    # ---- config B: larger batch, bf16 MXU operands, tiled + padded grid --------
    # (M=384 -> padded to 512, two 256-row blocks; exercises the pipelined path.)
    x_b = jax.random.normal(kx_b, (384, INITIAL), jnp.float32)
    kparams_bf16 = prepare_params(params, compute_dtype=jnp.bfloat16)
    out_b = jax.block_until_ready(fwd(x_b, kparams_bf16))
    assert out_b.shape == (384, 1) and out_b.dtype == jnp.float32
    # tight check vs a reference using the same bf16 operands / f32 accumulation
    ref_b = simplenet_matched_reference(x_b, kparams_bf16)
    assert jnp.allclose(out_b, ref_b, atol=2e-3, rtol=2e-3), "bf16 mismatch vs matched ref"
    # loose sanity bound vs the f32 PyTorch-semantics reference (expected bf16 drift)
    ref_b_f32 = simplenet_reference(x_b, params)
    assert jnp.allclose(out_b, ref_b_f32, atol=2e-1, rtol=5e-2), "bf16 drift too large"

    print("KERNEL_OK")
</pallas_src>

<mosaic_0001>
module attributes {stable_mosaic.version = 11 : i64} {
  func.func @_mlp_kernel(%arg0: i32, %arg1: memref<128x64xf32, #tpu.memory_space<vmem>>, %arg2: memref<128x128xf32, #tpu.memory_space<vmem>>, %arg3: memref<2x128x128xf32, #tpu.memory_space<vmem>>, %arg4: memref<128x1xf32, #tpu.memory_space<vmem>>, %arg5: memref<1x64xf32, #tpu.memory_space<vmem>>) attributes {dimension_semantics = [#tpu.dimension_semantics<parallel>], iteration_bounds = array<i64: 1>, scalar_prefetch = 0 : i64, scratch_operands = 0 : i64, tpu.core_type = #tpu.core_type<tc>, window_params = [{transform_indices = @transform_0, window_bounds = array<i64: 128, 64>}, {pipeline_mode = #tpu.pipeline_mode<synchronous>, transform_indices = @transform_1, window_bounds = array<i64: 128, 128>}, {pipeline_mode = #tpu.pipeline_mode<synchronous>, transform_indices = @transform_2, window_bounds = array<i64: 2, 128, 128>}, {pipeline_mode = #tpu.pipeline_mode<synchronous>, transform_indices = @transform_3, window_bounds = array<i64: 128, 1>}, {transform_indices = @transform_4, window_bounds = array<i64: 1, 64>}]} {
    %c0 = arith.constant 0 : index
    %c0_0 = arith.constant 0 : index
    %0 = vector.load %arg2[%c0, %c0_0] : memref<128x128xf32, #tpu.memory_space<vmem>>, vector<128x128xf32>
    %c0_1 = arith.constant 0 : index
    %c0_2 = arith.constant 0 : index
    %1 = vector.load %arg1[%c0_1, %c0_2] : memref<128x64xf32, #tpu.memory_space<vmem>>, vector<128x64xf32>
    %cst = arith.constant dense<0.000000e+00> : vector<128x64xf32>
    %2 = tpu.matmul %0, %1, %cst {dimension_numbers = #tpu.dot_dimension_numbers<[1], [0], [0], [1], [0, 0, 1, 1], [], []>} : vector<128x128xf32>, vector<128x64xf32>, vector<128x64xf32> -> vector<128x64xf32>
    %cst_3 = arith.constant 0.000000e+00 : f32
    %3 = vector.broadcast %cst_3 : f32 to vector<128x64xf32>
    %4 = arith.maximumf %2, %3 : vector<128x64xf32>
    %c0_4 = arith.constant 0 : index
    %c0_5 = arith.constant 0 : index
    %c0_6 = arith.constant 0 : index
    %5 = vector.load %arg3[%c0_4, %c0_5, %c0_6] : memref<2x128x128xf32, #tpu.memory_space<vmem>>, vector<1x128x128xf32>
    %6 = vector.shape_cast %5 : vector<1x128x128xf32> to vector<128x128xf32>
    %cst_7 = arith.constant dense<0.000000e+00> : vector<128x64xf32>
    %7 = tpu.matmul %6, %4, %cst_7 {dimension_numbers = #tpu.dot_dimension_numbers<[1], [0], [0], [1], [0, 0, 1, 1], [], []>} : vector<128x128xf32>, vector<128x64xf32>, vector<128x64xf32> -> vector<128x64xf32>
    %cst_8 = arith.constant 0.000000e+00 : f32
    %8 = vector.broadcast %cst_8 : f32 to vector<128x64xf32>
    %9 = arith.maximumf %7, %8 : vector<128x64xf32>
    %c1 = arith.constant 1 : index
    %c0_9 = arith.constant 0 : index
    %c0_10 = arith.constant 0 : index
    %10 = vector.load %arg3[%c1, %c0_9, %c0_10] : memref<2x128x128xf32, #tpu.memory_space<vmem>>, vector<1x128x128xf32>
    %11 = vector.shape_cast %10 : vector<1x128x128xf32> to vector<128x128xf32>
    %cst_11 = arith.constant dense<0.000000e+00> : vector<128x64xf32>
    %12 = tpu.matmul %11, %9, %cst_11 {dimension_numbers = #tpu.dot_dimension_numbers<[1], [0], [0], [1], [0, 0, 1, 1], [], []>} : vector<128x128xf32>, vector<128x64xf32>, vector<128x64xf32> -> vector<128x64xf32>
    %cst_12 = arith.constant 0.000000e+00 : f32
    %13 = vector.broadcast %cst_12 : f32 to vector<128x64xf32>
    %14 = arith.maximumf %12, %13 : vector<128x64xf32>
    %c0_13 = arith.constant 0 : index
    %c0_14 = arith.constant 0 : index
    %15 = vector.load %arg4[%c0_13, %c0_14] : memref<128x1xf32, #tpu.memory_space<vmem>>, vector<128x1xf32>
    %16 = vector.broadcast %15 : vector<128x1xf32> to vector<128x64xf32>
    %17 = arith.mulf %14, %16 : vector<128x64xf32>
    %cst_15 = arith.constant dense<0.000000e+00> : vector<64xf32>
    %18 = vector.multi_reduction <add>, %17, %cst_15 [0] : vector<128x64xf32> to vector<64xf32>
    %19 = vector.shape_cast %18 : vector<64xf32> to vector<1x64xf32>
    %c0_16 = arith.constant 0 : index
    %c0_17 = arith.constant 0 : index
    %20 = vector.load %arg5[%c0_16, %c0_17] : memref<1x64xf32, #tpu.memory_space<vmem>>, vector<1x64xf32>
    tpu.vector_store %arg5[%c0_16, %c0_17], %19 {strides = array<i32>} : memref<1x64xf32, #tpu.memory_space<vmem>>, vector<1x64xf32>,
    return
  }
  func.func @transform_0(%arg0: i32) -> (i32, i32) {
    %c0_i32 = arith.constant 0 : i32
    %c0_i32_0 = arith.constant 0 : i32
    return %c0_i32, %arg0 : i32, i32
  }
  func.func @transform_1(%arg0: i32) -> (i32, i32) {
    %c0_i32 = arith.constant 0 : i32
    %c0_i32_0 = arith.constant 0 : i32
    %c0_i32_1 = arith.constant 0 : i32
    return %c0_i32, %c0_i32_0 : i32, i32
  }
  func.func @transform_2(%arg0: i32) -> (i32, i32, i32) {
    %c0_i32 = arith.constant 0 : i32
    %c0_i32_0 = arith.constant 0 : i32
    %c0_i32_1 = arith.constant 0 : i32
    %c0_i32_2 = arith.constant 0 : i32
    return %c0_i32, %c0_i32_0, %c0_i32_1 : i32, i32, i32
  }
  func.func @transform_3(%arg0: i32) -> (i32, i32) {
    %c0_i32 = arith.constant 0 : i32
    %c0_i32_0 = arith.constant 0 : i32
    %c0_i32_1 = arith.constant 0 : i32
    return %c0_i32, %c0_i32_0 : i32, i32
  }
  func.func @transform_4(%arg0: i32) -> (i32, i32) {
    %c0_i32 = arith.constant 0 : i32
    %c0_i32_0 = arith.constant 0 : i32
    return %c0_i32, %arg0 : i32, i32
  }
}

</mosaic_0001>

<llo_original>
// kernel: simplenet_forward.1
$region0: #{simplenet_forward.1}
  #allocation0 [shape = 'u32[]', space=smem, size = 0x4, offset = 0x4, fixed_abs, tag = 'smem constant byte address 0x4 - core index']
  #allocation1 [shape = 'u32[144,128]{1,0:T(1,128)}', space=vmem, size = 0x12000, scoped, tag = 'internal scratch']
  %s0 = inlined_call_operand.hbm [shape: f32[128,64], index: 0, kind: input, shape index: {}]
  %s1 = inlined_call_operand.hbm [shape: f32[128,128], index: 1, kind: input, shape index: {}]
  %s2 = inlined_call_operand.hbm [shape: f32[2,128,128], index: 2, kind: input, shape index: {}]
  %s3 = inlined_call_operand.hbm [shape: f32[128,1], index: 3, kind: input, shape index: {}]
  %s4 = inlined_call_operand.hbm [shape: f32[1,64], index: 4, kind: output, shape index: {}]
  %s5 = sld [smem:[#allocation0]]
  $region42: #{simplenet_forward.1} parent=0
    _
  %s7 = ssub.s32 1, %s5
  %s8 = scalar_select 0, %s7, %s5
  $region1: #{simplenet_forward.1} parent=0
    #allocation2 [shape = 'u8[65536]{0}', space=vmem, size = 0x10000, scoped, tag = 'input window, operand 0, single buffered']
    #allocation3 [shape = 's32[1]{0}', space=sflag, size = 0x4, scoped, tag = 'scoped memory for simplenet_forward.1']
    #allocation4 [shape = 's32[1]{0}', space=sflag, size = 0x4, scoped, tag = 'scoped memory for simplenet_forward.1']
    #allocation5 [shape = 'u8[65536]{0}', space=vmem, size = 0x10000, scoped, tag = 'input window, operand 1, single buffered']
    #allocation6 [shape = 's32[1]{0}', space=sflag, size = 0x4, scoped, tag = 'scoped memory for simplenet_forward.1']
    #allocation7 [shape = 'u8[131072]{0}', space=vmem, size = 0x20000, scoped, tag = 'input window, operand 2, single buffered']
    #allocation8 [shape = 'u8[65536]{0}', space=vmem, size = 0x10000, scoped, tag = 'input window, operand 3, single buffered']
    #allocation9 [shape = 's32[1]{0}', space=sflag, size = 0x4, scoped, tag = 'scoped memory for simplenet_forward.1']
    #allocation10 [shape = 'u8[512]{0}', space=vmem, size = 0x400, scoped, tag = 'output window, operand 0, single buffered']
    %9 = vsyncpa [#allocation3], 0
    %10 = vsyncpa [#allocation6], 0
    %11 = vsyncpa [#allocation9], 0
    %12 = vsyncpa [#allocation4], 0
    // Predicated region
    $region2: #{simplenet_forward.1} parent=1 // pred_check
      _
    $region3: #{simplenet_forward.1} parent=1 // pred_check_branch
      %14 = sbr.rel (0) target = $region5
    $region4: #{simplenet_forward.1} parent=1 // pred_region
      %s16 = ssub.s32 2048, 2048
      %17 = vsyncadd [#allocation3], %s16
      %s18 = sshll.u32 [#allocation2], 4
      %s19 = int_to_ptr.vmem [resolvable:$true] %s18
      %24 = dma.hbm_to_vmem [thread:$0]  %s0, 2048, %s19, [#allocation3], 128, 128, 8
    $region5: #{simplenet_forward.1} parent=1 // pred_fallthru
      _
    // Predicated region
    $region6: #{simplenet_forward.1} parent=1 // pred_check
      _
    $region7: #{simplenet_forward.1} parent=1 // pred_check_branch
      %26 = sbr.rel (0) target = $region9
    $region8: #{simplenet_forward.1} parent=1 // pred_region
      %s28 = ssub.s32 2048, 2048
      %29 = vsyncadd [#allocation6], %s28
      %s30 = sshll.u32 [#allocation5], 4
      %s31 = int_to_ptr.vmem [resolvable:$true] %s30
      %36 = dma.hbm_to_vmem [thread:$0]  %s1, 2048, %s31, [#allocation6], 128, 128, 8
    $region9: #{simplenet_forward.1} parent=1 // pred_fallthru
      _
    // Predicated region
    $region10: #{simplenet_forward.1} parent=1 // pred_check
      _
    $region11: #{simplenet_forward.1} parent=1 // pred_check_branch
      %38 = sbr.rel (0) target = $region13
    $region12: #{simplenet_forward.1} parent=1 // pred_region
      %s40 = ssub.s32 4096, 4096
      %41 = vsyncadd [#allocation6], %s40
      %s42 = sshll.u32 [#allocation7], 4
      %s43 = int_to_ptr.vmem [resolvable:$true] %s42
      %48 = dma.hbm_to_vmem [thread:$0]  %s2, 4096, %s43, [#allocation6], 128, 128, 8
    $region13: #{simplenet_forward.1} parent=1 // pred_fallthru
      _
    // Predicated region
    $region14: #{simplenet_forward.1} parent=1 // pred_check
      _
    $region15: #{simplenet_forward.1} parent=1 // pred_check_branch
      %50 = sbr.rel (0) target = $region17
    $region16: #{simplenet_forward.1} parent=1 // pred_region
      %s52 = ssub.s32 2048, 2048
      %53 = vsyncadd [#allocation9], %s52
      %s54 = sshll.u32 [#allocation8], 4
      %s55 = int_to_ptr.vmem [resolvable:$true] %s54
      %60 = dma.hbm_to_vmem [thread:$0]  %s3, 2048, %s55, [#allocation9], 128, 128, 8
    $region17: #{simplenet_forward.1} parent=1 // pred_fallthru
      _
    // Predicated region
    $region18: #{simplenet_forward.1} parent=1 // pred_check
      _
    $region19: #{simplenet_forward.1} parent=1 // pred_check_branch
      %62 = sbr.rel (0) target = $region21
    $region20: #{simplenet_forward.1} parent=1 // pred_region
      %63 = dma.done [#allocation3], 2048
    $region21: #{simplenet_forward.1} parent=1 // pred_fallthru
      _
    // Predicated region
    $region22: #{simplenet_forward.1} parent=1 // pred_check
      _
    $region23: #{simplenet_forward.1} parent=1 // pred_check_branch
      %65 = sbr.rel (0) target = $region25
    $region24: #{simplenet_forward.1} parent=1 // pred_region
      %66 = dma.done [#allocation6], 2048
    $region25: #{simplenet_forward.1} parent=1 // pred_fallthru
      _
    // Predicated region
    $region26: #{simplenet_forward.1} parent=1 // pred_check
      _
    $region27: #{simplenet_forward.1} parent=1 // pred_check_branch
      %68 = sbr.rel (0) target = $region29
    $region28: #{simplenet_forward.1} parent=1 // pred_region
      %69 = dma.done [#allocation6], 4096
    $region29: #{simplenet_forward.1} parent=1 // pred_fallthru
      _
    // Predicated region
    $region30: #{simplenet_forward.1} parent=1 // pred_check
      _
    $region31: #{simplenet_forward.1} parent=1 // pred_check_branch
      %71 = sbr.rel (0) target = $region33
    $region32: #{simplenet_forward.1} parent=1 // pred_region
      %72 = dma.done [#allocation9], 2048
    $region33: #{simplenet_forward.1} parent=1 // pred_fallthru
      _
    %v73 = vld [vmem:[#allocation5] sm:$0xff]
    %v74 = vld [vmem:[#allocation5 + $0x8] sm:$0xff]
    %v75 = vld [vmem:[#allocation5 + $0x10] sm:$0xff]
    %v76 = vld [vmem:[#allocation5 + $0x18] sm:$0xff]
    %v77 = vld [vmem:[#allocation5 + $0x20] sm:$0xff]
    %v78 = vld [vmem:[#allocation5 + $0x28] sm:$0xff]
    %v79 = vld [vmem:[#allocation5 + $0x30] sm:$0xff]
    %v80 = vld [vmem:[#allocation5 + $0x38] sm:$0xff]
    %v81 = vld [vmem:[#allocation5 + $0x40] sm:$0xff]
    %v82 = vld [vmem:[#allocation5 + $0x48] sm:$0xff]
    %v83 = vld [vmem:[#allocation5 + $0x50] sm:$0xff]
    %v84 = vld [vmem:[#allocation5 + $0x58] sm:$0xff]
    %v85 = vld [vmem:[#allocation5 + $0x60] sm:$0xff]
    %v86 = vld [vmem:[#allocation5 + $0x68] sm:$0xff]
    %v87 = vld [vmem:[#allocation5 + $0x70] sm:$0xff]
    %v88 = vld [vmem:[#allocation5 + $0x78] sm:$0xff]
    %v89 = vld [vmem:[#allocation2] sm:$0xff]
    %v90 = vld [vmem:[#allocation2 + $0x8] sm:$0xff]
    %v91 = vld [vmem:[#allocation2 + $0x10] sm:$0xff]
    %v92 = vld [vmem:[#allocation2 + $0x18] sm:$0xff]
    %v93 = vld [vmem:[#allocation2 + $0x20] sm:$0xff]
    %v94 = vld [vmem:[#allocation2 + $0x28] sm:$0xff]
    %v95 = vld [vmem:[#allocation2 + $0x30] sm:$0xff]
    %v96 = vld [vmem:[#allocation2 + $0x38] sm:$0xff]
    %v97 = vld [vmem:[#allocation2 + $0x40] sm:$0xff]
    %v98 = vld [vmem:[#allocation2 + $0x48] sm:$0xff]
    %v99 = vld [vmem:[#allocation2 + $0x50] sm:$0xff]
    %v100 = vld [vmem:[#allocation2 + $0x58] sm:$0xff]
    %v101 = vld [vmem:[#allocation2 + $0x60] sm:$0xff]
    %v102 = vld [vmem:[#allocation2 + $0x68] sm:$0xff]
    %v103 = vld [vmem:[#allocation2 + $0x70] sm:$0xff]
    %v104 = vld [vmem:[#allocation2 + $0x78] sm:$0xff]
    %105 = vmatprep.subr.mxu0 0.0
    %106 = vmatpush1.msra.mxu0 %v89
    %107 = vmatprep.subr.mxu0 0.0
    %108 = vmatpush1.msra.mxu0 %v90
    %109 = vmatprep.subr.mxu0 0.0
    %110 = vmatpush1.msra.mxu0 %v91
    %111 = vmatprep.subr.mxu0 0.0
    %112 = vmatpush1.msra.mxu0 %v92
    %113 = vmatprep.subr.mxu0 0.0
    %114 = vmatpush1.msra.mxu0 %v93
    %115 = vmatprep.subr.mxu0 0.0
    %116 = vmatpush1.msra.mxu0 %v94
    %117 = vmatprep.subr.mxu0 0.0
    %118 = vmatpush1.msra.mxu0 %v95
    %119 = vmatprep.subr.mxu0 0.0
    %120 = vmatpush1.msra.mxu0 %v96
    %121 = vmatprep.subr.mxu0 0.0
    %122 = vmatpush1.msra.mxu0 %v97
    %123 = vmatprep.subr.mxu0 0.0
    %124 = vmatpush1.msra.mxu0 %v98
    %125 = vmatprep.subr.mxu0 0.0
    %126 = vmatpush1.msra.mxu0 %v99
    %127 = vmatprep.subr.mxu0 0.0
    %128 = vmatpush1.msra.mxu0 %v100
    %129 = vmatprep.subr.mxu0 0.0
    %130 = vmatpush1.msra.mxu0 %v101
    %131 = vmatprep.subr.mxu0 0.0
    %132 = vmatpush1.msra.mxu0 %v102
    %133 = vmatprep.subr.mxu0 0.0
    %134 = vmatpush1.msra.mxu0 %v103
    %135 = vmatprep.subr.mxu0 0.0
    %136 = vmatpush1.msra.mxu0 %v104
    %137 = vmatprep.subr.mxu0 0.0
    %138 = vmatpush1.msra.mxu0 0.0
    %139 = vmatprep.subr.mxu0 0.0
    %140 = vmatpush1.msra.mxu0 0.0
    %141 = vmatprep.subr.mxu0 0.0
    %142 = vmatpush1.msra.mxu0 0.0
    %143 = vmatprep.subr.mxu0 0.0
    %144 = vmatpush1.msra.mxu0 0.0
    %145 = vmatprep.subr.mxu0 0.0
    %146 = vmatpush1.msra.mxu0 0.0
    %147 = vmatprep.subr.mxu0 0.0
    %148 = vmatpush1.msra.mxu0 0.0
    %149 = vmatprep.subr.mxu0 0.0
    %150 = vmatpush1.msra.mxu0 0.0
    %151 = vmatprep.subr.mxu0 0.0
    %152 = vmatpush1.msra.mxu0 0.0
    %153 = vmatprep.subr.mxu0 0.0
    %154 = vmatpush1.msra.mxu0 0.0
    %155 = vmatprep.subr.mxu0 0.0
    %156 = vmatpush1.msra.mxu0 0.0
    %157 = vmatprep.subr.mxu0 0.0
    %158 = vmatpush1.msra.mxu0 0.0
    %159 = vmatprep.subr.mxu0 0.0
    %160 = vmatpush1.msra.mxu0 0.0
    %161 = vmatprep.subr.mxu0 0.0
    %162 = vmatpush1.msra.mxu0 0.0
    %163 = vmatprep.subr.mxu0 0.0
    %164 = vmatpush1.msra.mxu0 0.0
    %165 = vmatprep.subr.mxu0 0.0
    %166 = vmatpush1.msra.mxu0 0.0
    %167 = vmatprep.subr.mxu0 0.0
    %168 = vmatpush1.msra.mxu0 0.0
    %169 = vmatprep.mubr.f32.mxu0 0.0
    %170 = vmatmul.mubr.f32.gmra.mrb[0].mxu0 %v73
    %v171 = vpop.f32.mrb[0].mxu0
    %v172 = vadd.f32 0.0, %v171
    %v173 = vpop.f32.mrb[0].mxu0
    %174 = vmatprep.mubr.f32.mxu0 0.0
    %175 = vmatmul.mubr.f32.gmra.mrb[0].mxu0 %v74
    %v176 = vpop.f32.mrb[0].mxu0
    %v177 = vadd.f32 0.0, %v176
    %v178 = vpop.f32.mrb[0].mxu0
    %179 = vmatprep.mubr.f32.mxu0 0.0
    %180 = vmatmul.mubr.f32.gmra.mrb[0].mxu0 %v75
    %v181 = vpop.f32.mrb[0].mxu0
    %v182 = vadd.f32 0.0, %v181
    %v183 = vpop.f32.mrb[0].mxu0
    %184 = vmatprep.mubr.f32.mxu0 0.0
    %185 = vmatmul.mubr.f32.gmra.mrb[0].mxu0 %v76
    %v186 = vpop.f32.mrb[0].mxu0
    %v187 = vadd.f32 0.0, %v186
    %v188 = vpop.f32.mrb[0].mxu0
    %189 = vmatprep.mubr.f32.mxu0 0.0
    %190 = vmatmul.mubr.f32.gmra.mrb[0].mxu0 %v77
    %v191 = vpop.f32.mrb[0].mxu0
    %v192 = vadd.f32 0.0, %v191
    %v193 = vpop.f32.mrb[0].mxu0
    %194 = vmatprep.mubr.f32.mxu0 0.0
    %195 = vmatmul.mubr.f32.gmra.mrb[0].mxu0 %v78
    %v196 = vpop.f32.mrb[0].mxu0
    %v197 = vadd.f32 0.0, %v196
    %v198 = vpop.f32.mrb[0].mxu0
    %199 = vmatprep.mubr.f32.mxu0 0.0
    %200 = vmatmul.mubr.f32.gmra.mrb[0].mxu0 %v79
    %v201 = vpop.f32.mrb[0].mxu0
    %v202 = vadd.f32 0.0, %v201
    %v203 = vpop.f32.mrb[0].mxu0
    %204 = vmatprep.mubr.f32.mxu0 0.0
    %205 = vmatmul.mubr.f32.gmra.mrb[0].mxu0 %v80
    %v206 = vpop.f32.mrb[0].mxu0
    %v207 = vadd.f32 0.0, %v206
    %v208 = vpop.f32.mrb[0].mxu0
    %209 = vmatprep.mubr.f32.mxu0 0.0
    %210 = vmatmul.mubr.f32.gmra.mrb[0].mxu0 %v81
    %v211 = vpop.f32.mrb[0].mxu0
    %v212 = vadd.f32 0.0, %v211
    %v213 = vpop.f32.mrb[0].mxu0
    %214 = vmatprep.mubr.f32.mxu0 0.0
    %215 = vmatmul.mubr.f32.gmra.mrb[0].mxu0 %v82
    %v216 = vpop.f32.mrb[0].mxu0
    %v217 = vadd.f32 0.0, %v216
    %v218 = vpop.f32.mrb[0].mxu0
    %219 = vmatprep.mubr.f32.mxu0 0.0
    %220 = vmatmul.mubr.f32.gmra.mrb[0].mxu0 %v83
    %v221 = vpop.f32.mrb[0].mxu0
    %v222 = vadd.f32 0.0, %v221
    %v223 = vpop.f32.mrb[0].mxu0
    %224 = vmatprep.mubr.f32.mxu0 0.0
    %225 = vmatmul.mubr.f32.gmra.mrb[0].mxu0 %v84
    %v226 = vpop.f32.mrb[0].mxu0
    %v227 = vadd.f32 0.0, %v226
    %v228 = vpop.f32.mrb[0].mxu0
    %229 = vmatprep.mubr.f32.mxu0 0.0
    %230 = vmatmul.mubr.f32.gmra.mrb[0].mxu0 %v85
    %v231 = vpop.f32.mrb[0].mxu0
    %v232 = vadd.f32 0.0, %v231
    %v233 = vpop.f32.mrb[0].mxu0
    %234 = vmatprep.mubr.f32.mxu0 0.0
    %235 = vmatmul.mubr.f32.gmra.mrb[0].mxu0 %v86
    %v236 = vpop.f32.mrb[0].mxu0
    %v237 = vadd.f32 0.0, %v236
    %v238 = vpop.f32.mrb[0].mxu0
    %239 = vmatprep.mubr.f32.mxu0 0.0
    %240 = vmatmul.mubr.f32.gmra.mrb[0].mxu0 %v87
    %v241 = vpop.f32.mrb[0].mxu0
    %v242 = vadd.f32 0.0, %v241
    %v243 = vpop.f32.mrb[0].mxu0
    %244 = vmatprep.mubr.f32.mxu0 0.0
    %245 = vmatmul.mubr.f32.gmra.mrb[0].mxu0 %v88
    %v246 = vpop.f32.mrb[0].mxu0
    %v247 = vadd.f32 0.0, %v246
    %v248 = vpop.f32.mrb[0].mxu0
    %249 = vdwg.mxu0
    %v250 = vmax.f32 %v172, 0.0
    %v251 = vmax.f32 %v177, 0.0
    %v252 = vmax.f32 %v182, 0.0
    %v253 = vmax.f32 %v187, 0.0
    %v254 = vmax.f32 %v192, 0.0
    %v255 = vmax.f32 %v197, 0.0
    %v256 = vmax.f32 %v202, 0.0
    %v257 = vmax.f32 %v207, 0.0
    %v258 = vmax.f32 %v212, 0.0
    %v259 = vmax.f32 %v217, 0.0
    %v260 = vmax.f32 %v222, 0.0
    %v261 = vmax.f32 %v227, 0.0
    %v262 = vmax.f32 %v232, 0.0
    %v263 = vmax.f32 %v237, 0.0
    %v264 = vmax.f32 %v242, 0.0
    %v265 = vmax.f32 %v247, 0.0
    %v266 = vld [vmem:[#allocation7] sm:$0xff]
    %v267 = vld [vmem:[#allocation7 + $0x8] sm:$0xff]
    %v268 = vld [vmem:[#allocation7 + $0x10] sm:$0xff]
    %v269 = vld [vmem:[#allocation7 + $0x18] sm:$0xff]
    %v270 = vld [vmem:[#allocation7 + $0x20] sm:$0xff]
    %v271 = vld [vmem:[#allocation7 + $0x28] sm:$0xff]
    %v272 = vld [vmem:[#allocation7 + $0x30] sm:$0xff]
    %v273 = vld [vmem:[#allocation7 + $0x38] sm:$0xff]
    %v274 = vld [vmem:[#allocation7 + $0x40] sm:$0xff]
    %v275 = vld [vmem:[#allocation7 + $0x48] sm:$0xff]
    %v276 = vld [vmem:[#allocation7 + $0x50] sm:$0xff]
    %v277 = vld [vmem:[#allocation7 + $0x58] sm:$0xff]
    %v278 = vld [vmem:[#allocation7 + $0x60] sm:$0xff]
    %v279 = vld [vmem:[#allocation7 + $0x68] sm:$0xff]
    %v280 = vld [vmem:[#allocation7 + $0x70] sm:$0xff]
    %v281 = vld [vmem:[#allocation7 + $0x78] sm:$0xff]
    %282 = vmatprep.subr.mxu0 0.0
    %283 = vmatpush1.msra.mxu0 %v250
    %284 = vmatprep.subr.mxu0 0.0
    %285 = vmatpush1.msra.mxu0 %v251
    %286 = vmatprep.subr.mxu0 0.0
    %287 = vmatpush1.msra.mxu0 %v252
    %288 = vmatprep.subr.mxu0 0.0
    %289 = vmatpush1.msra.mxu0 %v253
    %290 = vmatprep.subr.mxu0 0.0
    %291 = vmatpush1.msra.mxu0 %v254
    %292 = vmatprep.subr.mxu0 0.0
    %293 = vmatpush1.msra.mxu0 %v255
    %294 = vmatprep.subr.mxu0 0.0
    %295 = vmatpush1.msra.mxu0 %v256
    %296 = vmatprep.subr.mxu0 0.0
    %297 = vmatpush1.msra.mxu0 %v257
    %298 = vmatprep.subr.mxu0 0.0
    %299 = vmatpush1.msra.mxu0 %v258
    %300 = vmatprep.subr.mxu0 0.0
    %301 = vmatpush1.msra.mxu0 %v259
    %302 = vmatprep.subr.mxu0 0.0
    %303 = vmatpush1.msra.mxu0 %v260
    %304 = vmatprep.subr.mxu0 0.0
    %305 = vmatpush1.msra.mxu0 %v261
    %306 = vmatprep.subr.mxu0 0.0
    %307 = vmatpush1.msra.mxu0 %v262
    %308 = vmatprep.subr.mxu0 0.0
    %309 = vmatpush1.msra.mxu0 %v263
    %310 = vmatprep.subr.mxu0 0.0
    %311 = vmatpush1.msra.mxu0 %v264
    %312 = vmatprep.subr.mxu0 0.0
    %313 = vmatpush1.msra.mxu0 %v265
    %314 = vmatprep.subr.mxu0 0.0
    %315 = vmatpush1.msra.mxu0 0.0
    %316 = vmatprep.subr.mxu0 0.0
    %317 = vmatpush1.msra.mxu0 0.0
    %318 = vmatprep.subr.mxu0 0.0
    %319 = vmatpush1.msra.mxu0 0.0
    %320 = vmatprep.subr.mxu0 0.0
    %321 = vmatpush1.msra.mxu0 0.0
    %322 = vmatprep.subr.mxu0 0.0
    %323 = vmatpush1.msra.mxu0 0.0
    %324 = vmatprep.subr.mxu0 0.0
    %325 = vmatpush1.msra.mxu0 0.0
    %326 = vmatprep.subr.mxu0 0.0
    %327 = vmatpush1.msra.mxu0 0.0
    %328 = vmatprep.subr.mxu0 0.0
    %329 = vmatpush1.msra.mxu0 0.0
    %330 = vmatprep.subr.mxu0 0.0
    %331 = vmatpush1.msra.mxu0 0.0
    %332 = vmatprep.subr.mxu0 0.0
    %333 = vmatpush1.msra.mxu0 0.0
    %334 = vmatprep.subr.mxu0 0.0
    %335 = vmatpush1.msra.mxu0 0.0
    %336 = vmatprep.subr.mxu0 0.0
    %337 = vmatpush1.msra.mxu0 0.0
    %338 = vmatprep.subr.mxu0 0.0
    %339 = vmatpush1.msra.mxu0 0.0
    %340 = vmatprep.subr.mxu0 0.0
    %341 = vmatpush1.msra.mxu0 0.0
    %342 = vmatprep.subr.mxu0 0.0
    %343 = vmatpush1.msra.mxu0 0.0
    %344 = vmatprep.subr.mxu0 0.0
    %345 = vmatpush1.msra.mxu0 0.0
    %346 = vmatprep.mubr.f32.mxu0 0.0
    %347 = vmatmul.mubr.f32.gmra.mrb[0].mxu0 %v266
    %v348 = vpop.f32.mrb[0].mxu0
    %v349 = vadd.f32 0.0, %v348
    %v350 = vpop.f32.mrb[0].mxu0
    %351 = vmatprep.mubr.f32.mxu0 0.0
    %352 = vmatmul.mubr.f32.gmra.mrb[0].mxu0 %v267
    %v353 = vpop.f32.mrb[0].mxu0
    %v354 = vadd.f32 0.0, %v353
    %v355 = vpop.f32.mrb[0].mxu0
    %356 = vmatprep.mubr.f32.mxu0 0.0
    %357 = vmatmul.mubr.f32.gmra.mrb[0].mxu0 %v268
    %v358 = vpop.f32.mrb[0].mxu0
    %v359 = vadd.f32 0.0, %v358
    %v360 = vpop.f32.mrb[0].mxu0
    %361 = vmatprep.mubr.f32.mxu0 0.0
    %362 = vmatmul.mubr.f32.gmra.mrb[0].mxu0 %v269
    %v363 = vpop.f32.mrb[0].mxu0
    %v364 = vadd.f32 0.0, %v363
    %v365 = vpop.f32.mrb[0].mxu0
    %366 = vmatprep.mubr.f32.mxu0 0.0
    %367 = vmatmul.mubr.f32.gmra.mrb[0].mxu0 %v270
    %v368 = vpop.f32.mrb[0].mxu0
    %v369 = vadd.f32 0.0, %v368
    %v370 = vpop.f32.mrb[0].mxu0
    %371 = vmatprep.mubr.f32.mxu0 0.0
    %372 = vmatmul.mubr.f32.gmra.mrb[0].mxu0 %v271
    %v373 = vpop.f32.mrb[0].mxu0
    %v374 = vadd.f32 0.0, %v373
    %v375 = vpop.f32.mrb[0].mxu0
    %376 = vmatprep.mubr.f32.mxu0 0.0
    %377 = vmatmul.mubr.f32.gmra.mrb[0].mxu0 %v272
    %v378 = vpop.f32.mrb[0].mxu0
    %v379 = vadd.f32 0.0, %v378
    %v380 = vpop.f32.mrb[0].mxu0
    %381 = vmatprep.mubr.f32.mxu0 0.0
    %382 = vmatmul.mubr.f32.gmra.mrb[0].mxu0 %v273
    %v383 = vpop.f32.mrb[0].mxu0
    %v384 = vadd.f32 0.0, %v383
    %v385 = vpop.f32.mrb[0].mxu0
    %386 = vmatprep.mubr.f32.mxu0 0.0
    %387 = vmatmul.mubr.f32.gmra.mrb[0].mxu0 %v274
    %v388 = vpop.f32.mrb[0].mxu0
    %v389 = vadd.f32 0.0, %v388
    %v390 = vpop.f32.mrb[0].mxu0
    %391 = vmatprep.mubr.f32.mxu0 0.0
    %392 = vmatmul.mubr.f32.gmra.mrb[0].mxu0 %v275
    %v393 = vpop.f32.mrb[0].mxu0
    %v394 = vadd.f32 0.0, %v393
    %v395 = vpop.f32.mrb[0].mxu0
    %396 = vmatprep.mubr.f32.mxu0 0.0
    %397 = vmatmul.mubr.f32.gmra.mrb[0].mxu0 %v276
    %v398 = vpop.f32.mrb[0].mxu0
    %v399 = vadd.f32 0.0, %v398
    %v400 = vpop.f32.mrb[0].mxu0
    %401 = vmatprep.mubr.f32.mxu0 0.0
    %402 = vmatmul.mubr.f32.gmra.mrb[0].mxu0 %v277
    %v403 = vpop.f32.mrb[0].mxu0
    %v404 = vadd.f32 0.0, %v403
    %v405 = vpop.f32.mrb[0].mxu0
    %406 = vmatprep.mubr.f32.mxu0 0.0
    %407 = vmatmul.mubr.f32.gmra.mrb[0].mxu0 %v278
    %v408 = vpop.f32.mrb[0].mxu0
    %v409 = vadd.f32 0.0, %v408
    %v410 = vpop.f32.mrb[0].mxu0
    %411 = vmatprep.mubr.f32.mxu0 0.0
    %412 = vmatmul.mubr.f32.gmra.mrb[0].mxu0 %v279
    %v413 = vpop.f32.mrb[0].mxu0
    %v414 = vadd.f32 0.0, %v413
    %v415 = vpop.f32.mrb[0].mxu0
    %416 = vmatprep.mubr.f32.mxu0 0.0
    %417 = vmatmul.mubr.f32.gmra.mrb[0].mxu0 %v280
    %v418 = vpop.f32.mrb[0].mxu0
    %v419 = vadd.f32 0.0, %v418
    %v420 = vpop.f32.mrb[0].mxu0
    %421 = vmatprep.mubr.f32.mxu0 0.0
    %422 = vmatmul.mubr.f32.gmra.mrb[0].mxu0 %v281
    %v423 = vpop.f32.mrb[0].mxu0
    %v424 = vadd.f32 0.0, %v423
    %v425 = vpop.f32.mrb[0].mxu0
    %426 = vdwg.mxu0
    %v427 = vmax.f32 %v349, 0.0
    %v428 = vmax.f32 %v354, 0.0
    %v429 = vmax.f32 %v359, 0.0
    %v430 = vmax.f32 %v364, 0.0
    %v431 = vmax.f32 %v369, 0.0
    %v432 = vmax.f32 %v374, 0.0
    %v433 = vmax.f32 %v379, 0.0
    %v434 = vmax.f32 %v384, 0.0
    %v435 = vmax.f32 %v389, 0.0
    %v436 = vmax.f32 %v394, 0.0
    %v437 = vmax.f32 %v399, 0.0
    %v438 = vmax.f32 %v404, 0.0
    %v439 = vmax.f32 %v409, 0.0
    %v440 = vmax.f32 %v414, 0.0
    %v441 = vmax.f32 %v419, 0.0
    %v442 = vmax.f32 %v424, 0.0
    %s443 = scalar_lea.vmem [#allocation7], 128
    %v444 = vld [vmem:[%s443] sm:$0xff]
    %v445 = vld [vmem:[%s443 + $0x8] sm:$0xff]
    %v446 = vld [vmem:[%s443 + $0x10] sm:$0xff]
    %v447 = vld [vmem:[%s443 + $0x18] sm:$0xff]
    %v448 = vld [vmem:[%s443 + $0x20] sm:$0xff]
    %v449 = vld [vmem:[%s443 + $0x28] sm:$0xff]
    %v450 = vld [vmem:[%s443 + $0x30] sm:$0xff]
    %v451 = vld [vmem:[%s443 + $0x38] sm:$0xff]
    %v452 = vld [vmem:[%s443 + $0x40] sm:$0xff]
    %v453 = vld [vmem:[%s443 + $0x48] sm:$0xff]
    %v454 = vld [vmem:[%s443 + $0x50] sm:$0xff]
    %v455 = vld [vmem:[%s443 + $0x58] sm:$0xff]
    %v456 = vld [vmem:[%s443 + $0x60] sm:$0xff]
    %v457 = vld [vmem:[%s443 + $0x68] sm:$0xff]
    %v458 = vld [vmem:[%s443 + $0x70] sm:$0xff]
    %v459 = vld [vmem:[%s443 + $0x78] sm:$0xff]
    %460 = vmatprep.subr.mxu0 0.0
    %461 = vmatpush1.msra.mxu0 %v427
    %462 = vmatprep.subr.mxu0 0.0
    %463 = vmatpush1.msra.mxu0 %v428
    %464 = vmatprep.subr.mxu0 0.0
    %465 = vmatpush1.msra.mxu0 %v429
    %466 = vmatprep.subr.mxu0 0.0
    %467 = vmatpush1.msra.mxu0 %v430
    %468 = vmatprep.subr.mxu0 0.0
    %469 = vmatpush1.msra.mxu0 %v431
    %470 = vmatprep.subr.mxu0 0.0
    %471 = vmatpush1.msra.mxu0 %v432
    %472 = vmatprep.subr.mxu0 0.0
    %473 = vmatpush1.msra.mxu0 %v433
    %474 = vmatprep.subr.mxu0 0.0
    %475 = vmatpush1.msra.mxu0 %v434
    %476 = vmatprep.subr.mxu0 0.0
    %477 = vmatpush1.msra.mxu0 %v435
    %478 = vmatprep.subr.mxu0 0.0
    %479 = vmatpush1.msra.mxu0 %v436
    %480 = vmatprep.subr.mxu0 0.0
    %481 = vmatpush1.msra.mxu0 %v437
    %482 = vmatprep.subr.mxu0 0.0
    %483 = vmatpush1.msra.mxu0 %v438
    %484 = vmatprep.subr.mxu0 0.0
    %485 = vmatpush1.msra.mxu0 %v439
    %486 = vmatprep.subr.mxu0 0.0
    %487 = vmatpush1.msra.mxu0 %v440
    %488 = vmatprep.subr.mxu0 0.0
    %489 = vmatpush1.msra.mxu0 %v441
    %490 = vmatprep.subr.mxu0 0.0
    %491 = vmatpush1.msra.mxu0 %v442
    %492 = vmatprep.subr.mxu0 0.0
    %493 = vmatpush1.msra.mxu0 0.0
    %494 = vmatprep.subr.mxu0 0.0
    %495 = vmatpush1.msra.mxu0 0.0
    %496 = vmatprep.subr.mxu0 0.0
    %497 = vmatpush1.msra.mxu0 0.0
    %498 = vmatprep.subr.mxu0 0.0
    %499 = vmatpush1.msra.mxu0 0.0
    %500 = vmatprep.subr.mxu0 0.0
    %501 = vmatpush1.msra.mxu0 0.0
    %502 = vmatprep.subr.mxu0 0.0
    %503 = vmatpush1.msra.mxu0 0.0
    %504 = vmatprep.subr.mxu0 0.0
    %505 = vmatpush1.msra.mxu0 0.0
    %506 = vmatprep.subr.mxu0 0.0
    %507 = vmatpush1.msra.mxu0 0.0
    %508 = vmatprep.subr.mxu0 0.0
    %509 = vmatpush1.msra.mxu0 0.0
    %510 = vmatprep.subr.mxu0 0.0
    %511 = vmatpush1.msra.mxu0 0.0
    %512 = vmatprep.subr.mxu0 0.0
    %513 = vmatpush1.msra.mxu0 0.0
    %514 = vmatprep.subr.mxu0 0.0
    %515 = vmatpush1.msra.mxu0 0.0
    %516 = vmatprep.subr.mxu0 0.0
    %517 = vmatpush1.msra.mxu0 0.0
    %518 = vmatprep.subr.mxu0 0.0
    %519 = vmatpush1.msra.mxu0 0.0
    %520 = vmatprep.subr.mxu0 0.0
    %521 = vmatpush1.msra.mxu0 0.0
    %522 = vmatprep.subr.mxu0 0.0
    %523 = vmatpush1.msra.mxu0 0.0
    %524 = vmatprep.mubr.f32.mxu0 0.0
    %525 = vmatmul.mubr.f32.gmra.mrb[0].mxu0 %v444
    %v526 = vpop.f32.mrb[0].mxu0
    %v527 = vadd.f32 0.0, %v526
    %v528 = vpop.f32.mrb[0].mxu0
    %529 = vmatprep.mubr.f32.mxu0 0.0
    %530 = vmatmul.mubr.f32.gmra.mrb[0].mxu0 %v445
    %v531 = vpop.f32.mrb[0].mxu0
    %v532 = vadd.f32 0.0, %v531
    %v533 = vpop.f32.mrb[0].mxu0
    %534 = vmatprep.mubr.f32.mxu0 0.0
    %535 = vmatmul.mubr.f32.gmra.mrb[0].mxu0 %v446
    %v536 = vpop.f32.mrb[0].mxu0
    %v537 = vadd.f32 0.0, %v536
    %v538 = vpop.f32.mrb[0].mxu0
    %539 = vmatprep.mubr.f32.mxu0 0.0
    %540 = vmatmul.mubr.f32.gmra.mrb[0].mxu0 %v447
    %v541 = vpop.f32.mrb[0].mxu0
    %v542 = vadd.f32 0.0, %v541
    %v543 = vpop.f32.mrb[0].mxu0
    %544 = vmatprep.mubr.f32.mxu0 0.0
    %545 = vmatmul.mubr.f32.gmra.mrb[0].mxu0 %v448
    %v546 = vpop.f32.mrb[0].mxu0
    %v547 = vadd.f32 0.0, %v546
    %v548 = vpop.f32.mrb[0].mxu0
    %549 = vmatprep.mubr.f32.mxu0 0.0
    %550 = vmatmul.mubr.f32.gmra.mrb[0].mxu0 %v449
    %v551 = vpop.f32.mrb[0].mxu0
    %v552 = vadd.f32 0.0, %v551
    %v553 = vpop.f32.mrb[0].mxu0
    %554 = vmatprep.mubr.f32.mxu0 0.0
    %555 = vmatmul.mubr.f32.gmra.mrb[0].mxu0 %v450
    %v556 = vpop.f32.mrb[0].mxu0
    %v557 = vadd.f32 0.0, %v556
    %v558 = vpop.f32.mrb[0].mxu0
    %559 = vmatprep.mubr.f32.mxu0 0.0
    %560 = vmatmul.mubr.f32.gmra.mrb[0].mxu0 %v451
    %v561 = vpop.f32.mrb[0].mxu0
    %v562 = vadd.f32 0.0, %v561
    %v563 = vpop.f32.mrb[0].mxu0
    %564 = vmatprep.mubr.f32.mxu0 0.0
    %565 = vmatmul.mubr.f32.gmra.mrb[0].mxu0 %v452
    %v566 = vpop.f32.mrb[0].mxu0
    %v567 = vadd.f32 0.0, %v566
    %v568 = vpop.f32.mrb[0].mxu0
    %569 = vmatprep.mubr.f32.mxu0 0.0
    %570 = vmatmul.mubr.f32.gmra.mrb[0].mxu0 %v453
    %v571 = vpop.f32.mrb[0].mxu0
    %v572 = vadd.f32 0.0, %v571
    %v573 = vpop.f32.mrb[0].mxu0
    %574 = vmatprep.mubr.f32.mxu0 0.0
    %575 = vmatmul.mubr.f32.gmra.mrb[0].mxu0 %v454
    %v576 = vpop.f32.mrb[0].mxu0
    %v577 = vadd.f32 0.0, %v576
    %v578 = vpop.f32.mrb[0].mxu0
    %579 = vmatprep.mubr.f32.mxu0 0.0
    %580 = vmatmul.mubr.f32.gmra.mrb[0].mxu0 %v455
    %v581 = vpop.f32.mrb[0].mxu0
    %v582 = vadd.f32 0.0, %v581
    %v583 = vpop.f32.mrb[0].mxu0
    %584 = vmatprep.mubr.f32.mxu0 0.0
    %585 = vmatmul.mubr.f32.gmra.mrb[0].mxu0 %v456
    %v586 = vpop.f32.mrb[0].mxu0
    %v587 = vadd.f32 0.0, %v586
    %v588 = vpop.f32.mrb[0].mxu0
    %589 = vmatprep.mubr.f32.mxu0 0.0
    %590 = vmatmul.mubr.f32.gmra.mrb[0].mxu0 %v457
    %v591 = vpop.f32.mrb[0].mxu0
    %v592 = vadd.f32 0.0, %v591
    %v593 = vpop.f32.mrb[0].mxu0
    %594 = vmatprep.mubr.f32.mxu0 0.0
    %595 = vmatmul.mubr.f32.gmra.mrb[0].mxu0 %v458
    %v596 = vpop.f32.mrb[0].mxu0
    %v597 = vadd.f32 0.0, %v596
    %v598 = vpop.f32.mrb[0].mxu0
    %599 = vmatprep.mubr.f32.mxu0 0.0
    %600 = vmatmul.mubr.f32.gmra.mrb[0].mxu0 %v459
    %v601 = vpop.f32.mrb[0].mxu0
    %v602 = vadd.f32 0.0, %v601
    %v603 = vpop.f32.mrb[0].mxu0
    %604 = vdwg.mxu0
    %v605 = vmax.f32 %v527, 0.0
    %v606 = vmax.f32 %v532, 0.0
    %v607 = vmax.f32 %v537, 0.0
    %v608 = vmax.f32 %v542, 0.0
    %v609 = vmax.f32 %v547, 0.0
    %v610 = vmax.f32 %v552, 0.0
    %v611 = vmax.f32 %v557, 0.0
    %v612 = vmax.f32 %v562, 0.0
    %v613 = vmax.f32 %v567, 0.0
    %v614 = vmax.f32 %v572, 0.0
    %v615 = vmax.f32 %v577, 0.0
    %v616 = vmax.f32 %v582, 0.0
    %v617 = vmax.f32 %v587, 0.0
    %v618 = vmax.f32 %v592, 0.0
    %v619 = vmax.f32 %v597, 0.0
    %v620 = vmax.f32 %v602, 0.0
    %v621 = vld [vmem:[#allocation8] sm:$0xff]
    %v622 = vld [vmem:[#allocation8 + $0x8] sm:$0xff]
    %v623 = vld [vmem:[#allocation8 + $0x10] sm:$0xff]
    %v624 = vld [vmem:[#allocation8 + $0x18] sm:$0xff]
    %v625 = vld [vmem:[#allocation8 + $0x20] sm:$0xff]
    %v626 = vld [vmem:[#allocation8 + $0x28] sm:$0xff]
    %v627 = vld [vmem:[#allocation8 + $0x30] sm:$0xff]
    %v628 = vld [vmem:[#allocation8 + $0x38] sm:$0xff]
    %v629 = vld [vmem:[#allocation8 + $0x40] sm:$0xff]
    %v630 = vld [vmem:[#allocation8 + $0x48] sm:$0xff]
    %v631 = vld [vmem:[#allocation8 + $0x50] sm:$0xff]
    %v632 = vld [vmem:[#allocation8 + $0x58] sm:$0xff]
    %v633 = vld [vmem:[#allocation8 + $0x60] sm:$0xff]
    %v634 = vld [vmem:[#allocation8 + $0x68] sm:$0xff]
    %v635 = vld [vmem:[#allocation8 + $0x70] sm:$0xff]
    %v636 = vld [vmem:[#allocation8 + $0x78] sm:$0xff]
    %638 = vset.pattern.permute.xlu0 0
    %639 = vperm.xlu0 %638, %v621
    %v640 = vpop.permute.xlu0 %639
    %643 = vset.pattern.permute.xlu0 0
    %644 = vperm.xlu0 %643, %v622
    %v645 = vpop.permute.xlu0 %644
    %648 = vset.pattern.permute.xlu0 0
    %649 = vperm.xlu0 %648, %v623
    %v650 = vpop.permute.xlu0 %649
    %653 = vset.pattern.permute.xlu0 0
    %654 = vperm.xlu0 %653, %v624
    %v655 = vpop.permute.xlu0 %654
    %658 = vset.pattern.permute.xlu0 0
    %659 = vperm.xlu0 %658, %v625
    %v660 = vpop.permute.xlu0 %659
    %663 = vset.pattern.permute.xlu0 0
    %664 = vperm.xlu0 %663, %v626
    %v665 = vpop.permute.xlu0 %664
    %668 = vset.pattern.permute.xlu0 0
    %669 = vperm.xlu0 %668, %v627
    %v670 = vpop.permute.xlu0 %669
    %673 = vset.pattern.permute.xlu0 0
    %674 = vperm.xlu0 %673, %v628
    %v675 = vpop.permute.xlu0 %674
    %678 = vset.pattern.permute.xlu0 0
    %679 = vperm.xlu0 %678, %v629
    %v680 = vpop.permute.xlu0 %679
    %683 = vset.pattern.permute.xlu0 0
    %684 = vperm.xlu0 %683, %v630
    %v685 = vpop.permute.xlu0 %684
    %688 = vset.pattern.permute.xlu0 0
    %689 = vperm.xlu0 %688, %v631
    %v690 = vpop.permute.xlu0 %689
    %693 = vset.pattern.permute.xlu0 0
    %694 = vperm.xlu0 %693, %v632
    %v695 = vpop.permute.xlu0 %694
    %698 = vset.pattern.permute.xlu0 0
    %699 = vperm.xlu0 %698, %v633
    %v700 = vpop.permute.xlu0 %699
    %703 = vset.pattern.permute.xlu0 0
    %704 = vperm.xlu0 %703, %v634
    %v705 = vpop.permute.xlu0 %704
    %708 = vset.pattern.permute.xlu0 0
    %709 = vperm.xlu0 %708, %v635
    %v710 = vpop.permute.xlu0 %709
    %713 = vset.pattern.permute.xlu0 0
    %714 = vperm.xlu0 %713, %v636
    %v715 = vpop.permute.xlu0 %714
    %v717 = vmul.f32 %v605, %v640
    %v718 = vmul.f32 %v606, %v645
    %v719 = vmul.f32 %v607, %v650
    %v720 = vmul.f32 %v608, %v655
    %v721 = vmul.f32 %v609, %v660
    %v722 = vmul.f32 %v610, %v665
    %v723 = vmul.f32 %v611, %v670
    %v724 = vmul.f32 %v612, %v675
    %v725 = vmul.f32 %v613, %v680
    %v726 = vmul.f32 %v614, %v685
    %v727 = vmul.f32 %v615, %v690
    %v728 = vmul.f32 %v616, %v695
    %v729 = vmul.f32 %v617, %v700
    %v730 = vmul.f32 %v618, %v705
    %v731 = vmul.f32 %v619, %v710
    %v732 = vmul.f32 %v620, %v715
    %vm733 = vcmask 523264
    %v734 = vsel %vm733, %v717, 0.0
    %v735 = vsel %vm733, %v718, 0.0
    %v736 = vadd.f32 %v734, %v735
    %v737 = vsel %vm733, %v719, 0.0
    %v738 = vadd.f32 %v736, %v737
    %v739 = vsel %vm733, %v720, 0.0
    %v740 = vadd.f32 %v738, %v739
    %v741 = vsel %vm733, %v721, 0.0
    %v742 = vadd.f32 %v740, %v741
    %v743 = vsel %vm733, %v722, 0.0
    %v744 = vadd.f32 %v742, %v743
    %v745 = vsel %vm733, %v723, 0.0
    %v746 = vadd.f32 %v744, %v745
    %v747 = vsel %vm733, %v724, 0.0
    %v748 = vadd.f32 %v746, %v747
    %v749 = vsel %vm733, %v725, 0.0
    %v750 = vadd.f32 %v748, %v749
    %v751 = vsel %vm733, %v726, 0.0
    %v752 = vadd.f32 %v750, %v751
    %v753 = vsel %vm733, %v727, 0.0
    %v754 = vadd.f32 %v752, %v753
    %v755 = vsel %vm733, %v728, 0.0
    %v756 = vadd.f32 %v754, %v755
    %v757 = vsel %vm733, %v729, 0.0
    %v758 = vadd.f32 %v756, %v757
    %v759 = vsel %vm733, %v730, 0.0
    %v760 = vadd.f32 %v758, %v759
    %v761 = vsel %vm733, %v731, 0.0
    %v762 = vadd.f32 %v760, %v761
    %v763 = vsel %vm733, %v732, 0.0
    %v764 = vadd.f32 %v762, %v763
    %v765 = vrot.slane %v764, 4
    %v766 = vadd.f32 %v764, %v765
    %v767 = vrot.slane %v766, 2
    %v768 = vadd.f32 %v766, %v767
    %v769 = vrot.slane %v768, 1
    %v770 = vadd.f32 %v768, %v769
    %vm771 = vcmask 516096
    %772 = vst.msk [vmem:[#allocation10] sm:$0x1] %vm771, %v770
    // Predicated region
    $region34: #{simplenet_forward.1} parent=1 // pred_check
      _
    $region35: #{simplenet_forward.1} parent=1 // pred_check_branch
      %774 = sbr.rel (0) target = $region37
    $region36: #{simplenet_forward.1} parent=1 // pred_region
      %s776 = ssub.s32 16, 16
      %777 = vsyncadd [#allocation4], %s776
      %s779 = sshll.u32 [#allocation10], 4
      %s780 = int_to_ptr.vmem [resolvable:$true] %s779
      %782 = dma.vmem_to_hbm [thread:$0]  %s780, 16, %s4, [#allocation4]
    $region37: #{simplenet_forward.1} parent=1 // pred_fallthru
      _
    // Predicated region
    $region38: #{simplenet_forward.1} parent=1 // pred_check
      _
    $region39: #{simplenet_forward.1} parent=1 // pred_check_branch
      %784 = sbr.rel (0) target = $region41
    $region40: #{simplenet_forward.1} parent=1 // pred_region
      %785 = dma.done [#allocation4], 16
    $region41: #{simplenet_forward.1} parent=1 // pred_fallthru
      _
    %786 = vsyncpa [#allocation3], 1
    %787 = vsyncpa [#allocation6], 1
    %788 = vsyncpa [#allocation9], 1
    %789 = vsyncpa [#allocation4], 1

</llo_original>
